<compile_context>
chip_gen: v7x
topology: tpu7x:2x2x1
jax: 0.10.0
libtpu: 0.0.40
codegen_flags: <defaults>
</compile_context>

<pallas_src>
import numpy as np
import jax
import jax.numpy as jnp
from jax import lax
from jax.experimental import pallas as pl
from jax.experimental.pallas import tpu as pltpu

_KRON_MAX_BYTES = 2 * 1024 * 1024  # use the fused (kron) resize operator when it is small


def _rup(x, m):
    return ((x + m - 1) // m) * m


def _bilinear_matrix(in_size, out_size):
    """F.interpolate(mode='bilinear', align_corners=False) as an (out, in) matrix."""
    W = np.zeros((out_size, in_size), dtype=np.float32)
    if in_size == out_size:
        np.fill_diagonal(W, 1.0)
        return W
    scale = in_size / out_size
    for i in range(out_size):
        src = max((i + 0.5) * scale - 0.5, 0.0)
        i0 = min(int(np.floor(src)), in_size - 1)
        i1 = min(i0 + 1, in_size - 1)
        frac = src - i0
        W[i, i0] += 1.0 - frac
        W[i, i1] += frac
    return W


def _hw_config():
    """(num_tensorcores, physical_vmem_bytes) with safe fallbacks."""
    try:
        kind = jax.devices()[0].device_kind.lower()
    except Exception:
        kind = ""
    ncores = 2 if ("v7" in kind or "tpu7" in kind) else 1   # megacore only on v7x
    try:
        vmem = int(getattr(pltpu.get_tpu_info(), "vmem_capacity_bytes", 0) or 0)
    except Exception:
        vmem = 0
    if vmem <= 0:
        vmem = 64 * 1024 * 1024   # smallest per-TC VMEM across generations
    return ncores, vmem


# ---------------------------------------------------------------------------
# Kernels
# ---------------------------------------------------------------------------
def _bce_flat_kernel(r_ref, x_ref, y_ref, o_ref, acc_ref):
    """Fused-resize path: p = x_flat @ R lands directly in the lane-dense
    (B, Ho*Wo) layout the EUP-bound log/BCE phase wants; zero relayouts."""
    i = pl.program_id(1)

    @pl.when(i == 0)
    def _init():
        acc_ref[...] = jnp.zeros_like(acc_ref)

    B = x_ref.shape[0]
    Lo = y_ref.shape[1]

    # One MXU matmul: bilinear resize of the whole batch (bf16 inputs stay bf16).
    p = jnp.dot(x_ref[...], r_ref[...], preferred_element_type=jnp.float32)  # (B, Lo)
    # Guard fp round-off: keep p in [0,1] so log(1-p) never sees a negative.
    p = jnp.clip(p, 0.0, 1.0)

    y = y_ref[...].astype(jnp.float32)
    # PyTorch binary_cross_entropy clamps the log terms at -100.
    log_p = jnp.maximum(jnp.log(p), -100.0)
    log_1mp = jnp.maximum(jnp.log(1.0 - p), -100.0)
    loss = -(y * log_p + (1.0 - y) * log_1mp)                                # (B, Lo)

    # Pure-VPU partial sum: fold the batch onto the 8-sublane accumulator.
    acc_ref[...] += jnp.sum(loss.reshape(B // 8, 8, Lo), axis=0)             # (8, Lo)

    @pl.when(i == pl.num_programs(1) - 1)
    def _finalize():
        total = jnp.sum(acc_ref[...])            # one cross-lane reduce per core
        r = lax.broadcasted_iota(jnp.int32, o_ref.shape, 0)
        c = lax.broadcasted_iota(jnp.int32, o_ref.shape, 1)
        o_ref[...] = jnp.where((r == 0) & (c == 0), total, 0.0)


def _bce_sep_kernel(wh_ref, wwt_ref, x_ref, y_ref, o_ref, acc_ref):
    """Separable resize, H-first ordering: relayouts carry Wi-wide data (not the
    wider Wo) and the final matmul lands directly in (B, Ho, Wo)."""
    i = pl.program_id(1)

    @pl.when(i == 0)
    def _init():
        acc_ref[...] = jnp.zeros_like(acc_ref)

    B, Hi, Wi = x_ref.shape
    _, Ho, Wo = y_ref.shape

    xt = x_ref[...].transpose(1, 0, 2).reshape(Hi, B * Wi)                   # (Hi, B*Wi)
    t = jnp.dot(wh_ref[...], xt, preferred_element_type=jnp.float32)         # (Ho, B*Wi)
    t = t.reshape(Ho, B, Wi).transpose(1, 0, 2).reshape(B * Ho, Wi)          # (B*Ho, Wi)
    p = jnp.dot(t, wwt_ref[...], preferred_element_type=jnp.float32)         # (B*Ho, Wo)
    p = jnp.clip(p, 0.0, 1.0).reshape(B, Ho, Wo)

    y = y_ref[...].astype(jnp.float32)
    log_p = jnp.maximum(jnp.log(p), -100.0)
    log_1mp = jnp.maximum(jnp.log(1.0 - p), -100.0)
    loss = -(y * log_p + (1.0 - y) * log_1mp)                                # (B, Ho, Wo)

    # Partial sum over the (major) batch axis only: pure VPU adds each step.
    acc_ref[...] += jnp.sum(loss, axis=0)                                    # (Ho, Wo)

    @pl.when(i == pl.num_programs(1) - 1)
    def _finalize():
        total = jnp.sum(acc_ref[...])
        r = lax.broadcasted_iota(jnp.int32, o_ref.shape, 0)
        c = lax.broadcasted_iota(jnp.int32, o_ref.shape, 1)
        o_ref[...] = jnp.where((r == 0) & (c == 0), total, 0.0)


# ---------------------------------------------------------------------------
# Wrapper
# ---------------------------------------------------------------------------
def new_bce_loss(y_pr, y_gt):
    """Equivalent of NewBCELoss().forward(y_pr, y_gt). Inputs are NCHW."""
    N, C, Hi, Wi = y_pr.shape
    Ng, Cg, Ho, Wo = y_gt.shape
    assert (N, C) == (Ng, Cg)
    nc = N * C
    Li, Lo = Hi * Wi, Ho * Wo

    ncores, vmem_phys = _hw_config()
    vmem_limit = max(32 << 20, min(vmem_phys - (16 << 20), 96 << 20))
    if ncores == 2:                       # v7x: only 64 MiB per TC, stay conservative
        vmem_limit = min(vmem_limit, 48 << 20)
    budget = int(0.7 * vmem_limit)        # leave headroom for compiler scratch

    mat_dtype = jnp.bfloat16 if y_pr.dtype == jnp.bfloat16 else jnp.float32
    xsize = y_pr.dtype.itemsize
    ysize = y_gt.dtype.itemsize
    msize = jnp.dtype(mat_dtype).itemsize

    wh = _bilinear_matrix(Hi, Ho)         # (Ho, Hi)
    ww = _bilinear_matrix(Wi, Wo)         # (Wo, Wi)

    use_flat = (Li * Lo * msize) <= _KRON_MAX_BYTES
    per_core = -(-nc // ncores)
    balign = 16 if (xsize == 2 or ysize == 2) else 8   # sublane packing of inputs

    if use_flat:
        # Fused resize operator R[ih*Wi+iw, oh*Wo+ow] = Wh[oh,ih] * Ww[ow,iw].
        r_mat = jnp.asarray(np.kron(wh, ww).T, dtype=mat_dtype)     # (Li, Lo)
        Lip, Lop = _rup(Li, 128), _rup(Lo, 128)
        # Corrected VMEM accounting: double-buffered blocks, lane padding, temps.
        fixed = 2 * _rup(Li, 8) * Lop * msize + 8 * Lop * 4 + 2 * 8 * 128 * 4
        per_img = 2 * Lip * xsize + 2 * Lop * ysize + 5 * Lop * 4
        x = y_pr.reshape(nc, Li)          # free metadata reshapes on contiguous HBM
        y = y_gt.reshape(nc, Lo)
    else:
        wh_j = jnp.asarray(wh, dtype=mat_dtype)                     # (Ho, Hi)
        wwt_j = jnp.asarray(ww.T, dtype=jnp.float32)                # (Wi, Wo)
        Wip, Wop = _rup(Wi, 128), _rup(Wo, 128)
        Hip8, Hop8 = _rup(Hi, 8), _rup(Ho, 8)
        fixed = (2 * Hop8 * _rup(Hi, 128) * msize + 2 * _rup(Wi, 8) * Wop * 4
                 + Hop8 * Wop * 4 + 2 * 8 * 128 * 4)
        per_img = (2 * Hip8 * Wip * xsize      # x block (double-buffered, padded)
                   + 2 * Hop8 * Wop * ysize    # y block
                   + Hi * Wi * xsize           # xT  (Hi, B*Wi)
                   + Ho * Wi * 4               # t   (Ho, B*Wi)
                   + Ho * Wip * 4              # t relayouted (B*Ho, Wi)
                   + Ho * Wop * 4              # p   (B*Ho, Wo)
                   + 3 * Hop8 * Wop * 4)       # p/loss/y in (B, Ho, Wo)
        x = y_pr.reshape(nc, Hi, Wi)
        y = y_gt.reshape(nc, Ho, Wo)

    # TODO(synk): add within-image Ho/Wo tiling for resolutions where a single
    # image block does not fit the VMEM budget (B is clamped to `balign` below).
    b_fit = max((budget - fixed) // max(per_img, 1), balign)
    B = int(min(b_fit, _rup(per_core, balign)))
    B = max(balign, (B // balign) * balign)
    steps = -(-per_core // B)
    nc_pad = ncores * steps * B
    if nc_pad != nc:
        # Zero padding contributes exactly 0 loss (p=0, y=0 with the -100 clamp).
        x = jnp.pad(x, ((0, nc_pad - nc),) + ((0, 0),) * (x.ndim - 1))
        y = jnp.pad(y, ((0, nc_pad - nc),) + ((0, 0),) * (y.ndim - 1))

    out_shape = jax.ShapeDtypeStruct((ncores * 8, 128), jnp.float32)
    out_spec = pl.BlockSpec((8, 128), lambda c, i: (c, 0))
    cparams = pltpu.CompilerParams(
        dimension_semantics=("parallel", "arbitrary"),
        vmem_limit_bytes=int(vmem_limit),
    )

    if use_flat:
        cost = pl.CostEstimate(
            flops=2 * nc_pad * Li * Lo + 8 * nc_pad * Lo,
            transcendentals=2 * nc_pad * Lo,
            bytes_accessed=int(nc_pad * (Li * xsize + Lo * ysize)
                               + Li * Lo * msize + ncores * 8 * 128 * 4),
        )
        out = pl.pallas_call(
            _bce_flat_kernel,
            out_shape=out_shape,
            grid_spec=pltpu.PrefetchScalarGridSpec(
                num_scalar_prefetch=0,
                grid=(ncores, steps),
                in_specs=[
                    pl.BlockSpec((Li, Lo), lambda c, i: (0, 0)),
                    pl.BlockSpec((B, Li), lambda c, i: (c * steps + i, 0)),
                    pl.BlockSpec((B, Lo), lambda c, i: (c * steps + i, 0)),
                ],
                out_specs=out_spec,
                scratch_shapes=[pltpu.VMEM((8, Lo), jnp.float32)],
            ),
            compiler_params=cparams,
            cost_estimate=cost,
        )(r_mat, x, y)
    else:
        cost = pl.CostEstimate(
            flops=2 * nc_pad * Ho * Wi * (Hi + Wo) + 8 * nc_pad * Lo,
            transcendentals=2 * nc_pad * Lo,
            bytes_accessed=int(nc_pad * (Li * xsize + Lo * ysize)
                               + (Ho * Hi + Wi * Wo) * 4 + ncores * 8 * 128 * 4),
        )
        out = pl.pallas_call(
            _bce_sep_kernel,
            out_shape=out_shape,
            grid_spec=pltpu.PrefetchScalarGridSpec(
                num_scalar_prefetch=0,
                grid=(ncores, steps),
                in_specs=[
                    pl.BlockSpec((Ho, Hi), lambda c, i: (0, 0)),
                    pl.BlockSpec((Wi, Wo), lambda c, i: (0, 0)),
                    pl.BlockSpec((B, Hi, Wi), lambda c, i: (c * steps + i, 0, 0)),
                    pl.BlockSpec((B, Ho, Wo), lambda c, i: (c * steps + i, 0, 0)),
                ],
                out_specs=out_spec,
                scratch_shapes=[pltpu.VMEM((Ho, Wo), jnp.float32)],
            ),
            compiler_params=cparams,
            cost_estimate=cost,
        )(wh_j, wwt_j, x, y)

    # Per-core partial sums sit at out[c*8, 0]; the rest of out is zero.
    return jnp.sum(out) / float(nc * Ho * Wo)


def _reference(y_pr, y_gt):
    """Pure-JAX reference for verification."""
    N, C, Hi, Wi = y_pr.shape
    _, _, Ho, Wo = y_gt.shape
    wh = jnp.asarray(_bilinear_matrix(Hi, Ho))
    ww = jnp.asarray(_bilinear_matrix(Wi, Wo))
    p = jnp.einsum('oh,nchw,pw->ncop', wh, y_pr.astype(jnp.float32), ww)
    p = jnp.clip(p, 0.0, 1.0)
    y = y_gt.astype(jnp.float32)
    log_p = jnp.maximum(jnp.log(p), -100.0)
    log_1mp = jnp.maximum(jnp.log(1.0 - p), -100.0)
    return jnp.mean(-(y * log_p + (1.0 - y) * log_1mp))


if __name__ == "__main__":
    key = jax.random.PRNGKey(0)
    k1, k2, k3, k4 = jax.random.split(key, 4)

    # Test 1: fused-resize (lane-dense) path, f32.
    y_pr = jax.nn.sigmoid(jax.random.normal(k1, (2, 4, 8, 8), dtype=jnp.float32))
    y_gt = (jax.random.uniform(k2, (2, 4, 16, 16)) < 0.5).astype(jnp.float32)
    loss = jax.block_until_ready(new_bce_loss(y_pr, y_gt))
    ref = jax.block_until_ready(_reference(y_pr, y_gt))
    assert np.allclose(np.asarray(loss), np.asarray(ref), rtol=1e-5, atol=1e-5), (
        f"flat path mismatch: kernel={loss} ref={ref}")

    # Test 2: separable H-first path (large upsampled map, Wo >= 128), f32.
    y_pr2 = jax.nn.sigmoid(jax.random.normal(k3, (1, 2, 32, 64), dtype=jnp.float32))
    y_gt2 = (jax.random.uniform(k4, (1, 2, 64, 128)) < 0.5).astype(jnp.float32)
    loss2 = jax.block_until_ready(new_bce_loss(y_pr2, y_gt2))
    ref2 = jax.block_until_ready(_reference(y_pr2, y_gt2))
    assert np.allclose(np.asarray(loss2), np.asarray(ref2), rtol=1e-4, atol=1e-4), (
        f"separable path mismatch: kernel={loss2} ref={ref2}")

    # Test 3: bf16 predictions go straight to the MXU (no f32 up-cast in VMEM).
    loss3 = jax.block_until_ready(new_bce_loss(y_pr.astype(jnp.bfloat16), y_gt))
    ref3 = jax.block_until_ready(_reference(y_pr.astype(jnp.bfloat16), y_gt))
    assert np.allclose(np.asarray(loss3), np.asarray(ref3), rtol=2e-3, atol=2e-3), (
        f"bf16 path mismatch: kernel={loss3} ref={ref3}")

    print("KERNEL_OK")
</pallas_src>

<mosaic_0001>
module attributes {stable_mosaic.version = 11 : i64} {
  func.func @_bce_flat_kernel(%arg0: i32, %arg1: i32, %arg2: memref<64x256xf32, #tpu.memory_space<vmem>>, %arg3: memref<8x64xf32, #tpu.memory_space<vmem>>, %arg4: memref<8x256xf32, #tpu.memory_space<vmem>>, %arg5: memref<8x128xf32, #tpu.memory_space<vmem>>, %arg6: memref<8x256xf32, #tpu.memory_space<vmem>>) attributes {dimension_semantics = [#tpu.dimension_semantics<parallel>, #tpu.dimension_semantics<arbitrary>], iteration_bounds = array<i64: 1, 1>, scalar_prefetch = 0 : i64, scratch_operands = 1 : i64, tpu.core_type = #tpu.core_type<tc>, window_params = [{pipeline_mode = #tpu.pipeline_mode<synchronous>, transform_indices = @transform_0, window_bounds = array<i64: 64, 256>}, {transform_indices = @transform_1, window_bounds = array<i64: 8, 64>}, {transform_indices = @transform_2, window_bounds = array<i64: 8, 256>}, {transform_indices = @transform_3, window_bounds = array<i64: 8, 128>}]} {
    %c0_i32 = arith.constant 0 : i32
    %0 = arith.cmpi eq, %arg1, %c0_i32 : i32
    %1 = arith.extui %0 : i1 to i32
    %c0_i32_0 = arith.constant 0 : i32
    %2 = arith.cmpi ne, %1, %c0_i32_0 : i32
    scf.if %2 {
      %cst_20 = arith.constant 0.000000e+00 : f32
      %34 = vector.broadcast %cst_20 : f32 to vector<8x256xf32>
      %c0_21 = arith.constant 0 : index
      %c0_22 = arith.constant 0 : index
      %35 = vector.load %arg6[%c0_21, %c0_22] : memref<8x256xf32, #tpu.memory_space<vmem>>, vector<8x256xf32>
      tpu.vector_store %arg6[%c0_21, %c0_22], %34 {strides = array<i32>} : memref<8x256xf32, #tpu.memory_space<vmem>>, vector<8x256xf32>,
    } else {
    }
    %c0 = arith.constant 0 : index
    %c0_1 = arith.constant 0 : index
    %3 = vector.load %arg3[%c0, %c0_1] : memref<8x64xf32, #tpu.memory_space<vmem>>, vector<8x64xf32>
    %c0_2 = arith.constant 0 : index
    %c0_3 = arith.constant 0 : index
    %4 = vector.load %arg2[%c0_2, %c0_3] : memref<64x256xf32, #tpu.memory_space<vmem>>, vector<64x256xf32>
    %cst = arith.constant dense<0.000000e+00> : vector<8x256xf32>
    %5 = tpu.matmul %3, %4, %cst {dimension_numbers = #tpu.dot_dimension_numbers<[1], [0], [0], [1], [0, 0, 1, 1], [], []>} : vector<8x64xf32>, vector<64x256xf32>, vector<8x256xf32> -> vector<8x256xf32>
    %cst_4 = arith.constant 0.000000e+00 : f32
    %cst_5 = arith.constant 1.000000e+00 : f32
    %6 = vector.broadcast %cst_4 : f32 to vector<8x256xf32>
    %7 = arith.maximumf %6, %5 : vector<8x256xf32>
    %8 = vector.broadcast %cst_5 : f32 to vector<8x256xf32>
    %9 = arith.minimumf %8, %7 : vector<8x256xf32>
    %c0_6 = arith.constant 0 : index
    %c0_7 = arith.constant 0 : index
    %10 = vector.load %arg4[%c0_6, %c0_7] : memref<8x256xf32, #tpu.memory_space<vmem>>, vector<8x256xf32>
    %11 = math.log %9 : vector<8x256xf32>
    %cst_8 = arith.constant -1.000000e+02 : f32
    %12 = vector.broadcast %cst_8 : f32 to vector<8x256xf32>
    %13 = arith.maximumf %11, %12 : vector<8x256xf32>
    %cst_9 = arith.constant 1.000000e+00 : f32
    %14 = vector.broadcast %cst_9 : f32 to vector<8x256xf32>
    %15 = arith.subf %14, %9 : vector<8x256xf32>
    %16 = math.log %15 : vector<8x256xf32>
    %cst_10 = arith.constant -1.000000e+02 : f32
    %17 = vector.broadcast %cst_10 : f32 to vector<8x256xf32>
    %18 = arith.maximumf %16, %17 : vector<8x256xf32>
    %19 = arith.mulf %10, %13 : vector<8x256xf32>
    %cst_11 = arith.constant 1.000000e+00 : f32
    %20 = vector.broadcast %cst_11 : f32 to vector<8x256xf32>
    %21 = arith.subf %20, %10 : vector<8x256xf32>
    %22 = arith.mulf %21, %18 : vector<8x256xf32>
    %23 = arith.addf %19, %22 : vector<8x256xf32>
    %cst_12 = arith.constant 0.000000e+00 : f32
    %24 = vector.broadcast %cst_12 : f32 to vector<8x256xf32>
    %25 = arith.subf %24, %23 : vector<8x256xf32>
    %c0_13 = arith.constant 0 : index
    %c0_14 = arith.constant 0 : index
    %26 = vector.load %arg6[%c0_13, %c0_14] : memref<8x256xf32, #tpu.memory_space<vmem>>, vector<8x256xf32>
    %27 = vector.shape_cast %25 : vector<8x256xf32> to vector<1x8x256xf32>
    %cst_15 = arith.constant dense<0.000000e+00> : vector<8x256xf32>
    %28 = vector.multi_reduction <add>, %27, %cst_15 [0] : vector<1x8x256xf32> to vector<8x256xf32>
    %29 = arith.addf %26, %28 : vector<8x256xf32>
    %c0_16 = arith.constant 0 : index
    %c0_17 = arith.constant 0 : index
    %30 = vector.load %arg6[%c0_16, %c0_17] : memref<8x256xf32, #tpu.memory_space<vmem>>, vector<8x256xf32>
    tpu.vector_store %arg6[%c0_16, %c0_17], %29 {strides = array<i32>} : memref<8x256xf32, #tpu.memory_space<vmem>>, vector<8x256xf32>,
    %c0_i32_18 = arith.constant 0 : i32
    %31 = arith.cmpi eq, %arg1, %c0_i32_18 : i32
    %32 = arith.extui %31 : i1 to i32
    %c0_i32_19 = arith.constant 0 : i32
    %33 = arith.cmpi ne, %32, %c0_i32_19 : i32
    scf.if %33 {
      %c0_20 = arith.constant 0 : index
      %c0_21 = arith.constant 0 : index
      %34 = vector.load %arg6[%c0_20, %c0_21] : memref<8x256xf32, #tpu.memory_space<vmem>>, vector<8x256xf32>
      %35 = vector.shape_cast %34 : vector<8x256xf32> to vector<1x8x256xf32>
      %cst_22 = arith.constant dense<0.000000e+00> : vector<1xf32>
      %36 = vector.multi_reduction <add>, %35, %cst_22 [1, 2] : vector<1x8x256xf32> to vector<1xf32>
      %37 = vector.shape_cast %36 : vector<1xf32> to vector<1x1x1xf32>
      %38 = vector.extract %37[0, 0, 0] : f32 from vector<1x1x1xf32>
      %39 = tpu.iota {dimensions = array<i32: 0>} : vector<8x128xi32>
      %40 = tpu.iota {dimensions = array<i32: 1>} : vector<8x128xi32>
      %c0_i32_23 = arith.constant 0 : i32
      %41 = vector.broadcast %c0_i32_23 : i32 to vector<8x128xi32>
      %42 = arith.cmpi eq, %39, %41 : vector<8x128xi32>
      %c0_i32_24 = arith.constant 0 : i32
      %43 = vector.broadcast %c0_i32_24 : i32 to vector<8x128xi32>
      %44 = arith.cmpi eq, %40, %43 : vector<8x128xi32>
      %45 = arith.andi %42, %44 : vector<8x128xi1>
      %cst_25 = arith.constant 0.000000e+00 : f32
      %46 = vector.broadcast %38 : f32 to vector<8x128xf32>
      %47 = vector.broadcast %cst_25 : f32 to vector<8x128xf32>
      %48 = arith.select %45, %46, %47 : vector<8x128xi1>, vector<8x128xf32>
      %c0_26 = arith.constant 0 : index
      %c0_27 = arith.constant 0 : index
      %49 = vector.load %arg5[%c0_26, %c0_27] : memref<8x128xf32, #tpu.memory_space<vmem>>, vector<8x128xf32>
      tpu.vector_store %arg5[%c0_26, %c0_27], %48 {strides = array<i32>} : memref<8x128xf32, #tpu.memory_space<vmem>>, vector<8x128xf32>,
    } else {
    }
    return
  }
  func.func @transform_0(%arg0: i32, %arg1: i32) -> (i32, i32) {
    %c0_i32 = arith.constant 0 : i32
    %c0_i32_0 = arith.constant 0 : i32
    %c0_i32_1 = arith.constant 0 : i32
    return %c0_i32, %c0_i32_0 : i32, i32
  }
  func.func @transform_1(%arg0: i32, %arg1: i32) -> (i32, i32) {
    %c1_i32 = arith.constant 1 : i32
    %0 = arith.muli %arg0, %c1_i32 : i32
    %1 = arith.addi %0, %arg1 : i32
    %c0_i32 = arith.constant 0 : i32
    %c0_i32_0 = arith.constant 0 : i32
    return %1, %c0_i32 : i32, i32
  }
  func.func @transform_2(%arg0: i32, %arg1: i32) -> (i32, i32) {
    %c1_i32 = arith.constant 1 : i32
    %0 = arith.muli %arg0, %c1_i32 : i32
    %1 = arith.addi %0, %arg1 : i32
    %c0_i32 = arith.constant 0 : i32
    %c0_i32_0 = arith.constant 0 : i32
    return %1, %c0_i32 : i32, i32
  }
  func.func @transform_3(%arg0: i32, %arg1: i32) -> (i32, i32) {
    %c0_i32 = arith.constant 0 : i32
    %c0_i32_0 = arith.constant 0 : i32
    return %arg0, %c0_i32 : i32, i32
  }
}

</mosaic_0001>

<llo_original>
// kernel: tpu_custom_call.1
$region0: #{tpu_custom_call.1}
  #allocation0 [shape = 'u32[]', space=smem, size = 0x4, offset = 0x4, fixed_abs, tag = 'smem constant byte address 0x4 - core index']
  #allocation1 [shape = 'u32[144,128]{1,0:T(1,128)}', space=vmem, size = 0x12000, scoped, tag = 'internal scratch']
  #allocation2 [shape = 'f32[8,256]{1,0:T(8,128)}', space=vmem, size = 0x2000, scoped, tag = 'scratch operand']
  %s0 = inlined_call_operand.hbm [shape: f32[64,256], index: 0, kind: input, shape index: {}]
  %s1 = inlined_call_operand.hbm [shape: f32[8,64], index: 1, kind: input, shape index: {}]
  %s2 = inlined_call_operand.hbm [shape: f32[8,256], index: 2, kind: input, shape index: {}]
  %s3 = inlined_call_operand.hbm [shape: f32[8,128], index: 3, kind: output, shape index: {}]
  %s4 = sld [smem:[#allocation0]]
  $region42: #{tpu_custom_call.1} parent=0
    _
  %s6 = ssub.s32 1, %s4
  %s7 = scalar_select 0, %s6, %s4
  $region1: #{tpu_custom_call.1} parent=0
    #allocation3 [shape = 'u8[65536]{0}', space=vmem, size = 0x10000, scoped, tag = 'input window, operand 0, single buffered']
    #allocation4 [shape = 's32[1]{0}', space=sflag, size = 0x4, scoped, tag = 'scoped memory for tpu_custom_call.1']
    #allocation5 [shape = 's32[1]{0}', space=sflag, size = 0x4, scoped, tag = 'scoped memory for tpu_custom_call.1']
    #allocation6 [shape = 'u8[4096]{0}', space=vmem, size = 0x1000, scoped, tag = 'input window, operand 1, single buffered']
    #allocation7 [shape = 's32[1]{0}', space=sflag, size = 0x4, scoped, tag = 'scoped memory for tpu_custom_call.1']
    #allocation8 [shape = 'u8[8192]{0}', space=vmem, size = 0x2000, scoped, tag = 'input window, operand 2, single buffered']
    #allocation9 [shape = 'u8[4096]{0}', space=vmem, size = 0x1000, scoped, tag = 'output window, operand 0, single buffered']
    %8 = vsyncpa [#allocation4], 0
    %9 = vsyncpa [#allocation7], 0
    %10 = vsyncpa [#allocation5], 0
    // Predicated region
    $region2: #{tpu_custom_call.1} parent=1 // pred_check
      _
    $region3: #{tpu_custom_call.1} parent=1 // pred_check_branch
      %12 = sbr.rel (0) target = $region5
    $region4: #{tpu_custom_call.1} parent=1 // pred_region
      %s14 = ssub.s32 2048, 2048
      %15 = vsyncadd [#allocation4], %s14
      %s16 = sshll.u32 [#allocation3], 4
      %s17 = int_to_ptr.vmem [resolvable:$true] %s16
      %22 = dma.hbm_to_vmem [thread:$0]  %s0, 2048, %s17, [#allocation4], 256, 256, 16
    $region5: #{tpu_custom_call.1} parent=1 // pred_fallthru
      _
    // Predicated region
    $region6: #{tpu_custom_call.1} parent=1 // pred_check
      _
    $region7: #{tpu_custom_call.1} parent=1 // pred_check_branch
      %24 = sbr.rel (0) target = $region9
    $region8: #{tpu_custom_call.1} parent=1 // pred_region
      %s25 = sadd.s32 0, 0
      %s27 = ssub.s32 128, 128
      %28 = vsyncadd [#allocation7], %s27
      %s29 = smul.addr %s25, 128
      %s30 = scalar_lea.hbm %s1, %s29
      %s32 = sshll.u32 [#allocation6], 4
      %s33 = int_to_ptr.vmem [resolvable:$true] %s32
      %35 = dma.hbm_to_vmem [thread:$0]  %s30, 128, %s33, [#allocation7]
    $region9: #{tpu_custom_call.1} parent=1 // pred_fallthru
      _
    // Predicated region
    $region10: #{tpu_custom_call.1} parent=1 // pred_check
      _
    $region11: #{tpu_custom_call.1} parent=1 // pred_check_branch
      %37 = sbr.rel (0) target = $region13
    $region12: #{tpu_custom_call.1} parent=1 // pred_region
      %s38 = sadd.s32 0, 0
      %s40 = ssub.s32 256, 256
      %41 = vsyncadd [#allocation7], %s40
      %s42 = smul.addr %s38, 2
      %s43 = smul.addr %s42, 128
      %s44 = scalar_lea.hbm %s2, %s43
      %s46 = sshll.u32 [#allocation8], 4
      %s47 = int_to_ptr.vmem [resolvable:$true] %s46
      %49 = dma.hbm_to_vmem [thread:$0]  %s44, 256, %s47, [#allocation7]
    $region13: #{tpu_custom_call.1} parent=1 // pred_fallthru
      _
    // Predicated region
    $region14: #{tpu_custom_call.1} parent=1 // pred_check
      _
    $region15: #{tpu_custom_call.1} parent=1 // pred_check_branch
      %51 = sbr.rel (0) target = $region17
    $region16: #{tpu_custom_call.1} parent=1 // pred_region
      %52 = dma.done [#allocation4], 2048
    $region17: #{tpu_custom_call.1} parent=1 // pred_fallthru
      _
    // Predicated region
    $region18: #{tpu_custom_call.1} parent=1 // pred_check
      _
    $region19: #{tpu_custom_call.1} parent=1 // pred_check_branch
      %54 = sbr.rel (0) target = $region21
    $region20: #{tpu_custom_call.1} parent=1 // pred_region
      %55 = dma.done [#allocation7], 128
    $region21: #{tpu_custom_call.1} parent=1 // pred_fallthru
      _
    // Predicated region
    $region22: #{tpu_custom_call.1} parent=1 // pred_check
      _
    $region23: #{tpu_custom_call.1} parent=1 // pred_check_branch
      %57 = sbr.rel (0) target = $region25
    $region24: #{tpu_custom_call.1} parent=1 // pred_region
      %58 = dma.done [#allocation7], 256
    $region25: #{tpu_custom_call.1} parent=1 // pred_fallthru
      _
    %s59 = sadd.s32 0, 0
    %s60 = sadd.s32 0, 0
    %p61 = scmp.eq.s32.totalorder 0, 0
    // Predicated region
    $region26: #{tpu_custom_call.1} parent=1 // pred_check
      %p62 = pneg %p61
    $region27: #{tpu_custom_call.1} parent=1 // pred_check_branch
      %64 = sbr.rel (%p62) target = $region29
    $region28: #{tpu_custom_call.1} parent=1 // pred_region
      %65 = vst [vmem:[#allocation2] sm:$0xff] 0.0
      %66 = vst [vmem:[#allocation2 + $0x8] sm:$0xff] 0.0
    $region29: #{tpu_custom_call.1} parent=1 // pred_fallthru
      _
    %v67 = vld [vmem:[#allocation6] sm:$0xff]
    %v68 = vld [vmem:[#allocation3] sm:$0xff]
    %v69 = vld [vmem:[#allocation3 + $0x8] sm:$0xff]
    %v70 = vld [vmem:[#allocation3 + $0x10] sm:$0xff]
    %v71 = vld [vmem:[#allocation3 + $0x18] sm:$0xff]
    %v72 = vld [vmem:[#allocation3 + $0x20] sm:$0xff]
    %v73 = vld [vmem:[#allocation3 + $0x28] sm:$0xff]
    %v74 = vld [vmem:[#allocation3 + $0x30] sm:$0xff]
    %v75 = vld [vmem:[#allocation3 + $0x38] sm:$0xff]
    %v76 = vld [vmem:[#allocation3 + $0x40] sm:$0xff]
    %v77 = vld [vmem:[#allocation3 + $0x48] sm:$0xff]
    %v78 = vld [vmem:[#allocation3 + $0x50] sm:$0xff]
    %v79 = vld [vmem:[#allocation3 + $0x58] sm:$0xff]
    %v80 = vld [vmem:[#allocation3 + $0x60] sm:$0xff]
    %v81 = vld [vmem:[#allocation3 + $0x68] sm:$0xff]
    %v82 = vld [vmem:[#allocation3 + $0x70] sm:$0xff]
    %v83 = vld [vmem:[#allocation3 + $0x78] sm:$0xff]
    %vm84 = vcmask 523264
    %v86 = vsel %vm84, %v67, 0
    %88 = vmatprep.subr.mxu0 %v69
    %89 = vmatpush1.msra.mxu0 %v68
    %90 = vmatprep.subr.mxu0 %v71
    %91 = vmatpush1.msra.mxu0 %v70
    %92 = vmatprep.subr.mxu0 %v73
    %93 = vmatpush1.msra.mxu0 %v72
    %94 = vmatprep.subr.mxu0 %v75
    %95 = vmatpush1.msra.mxu0 %v74
    %96 = vmatprep.subr.mxu0 %v77
    %97 = vmatpush1.msra.mxu0 %v76
    %98 = vmatprep.subr.mxu0 %v79
    %99 = vmatpush1.msra.mxu0 %v78
    %100 = vmatprep.subr.mxu0 %v81
    %101 = vmatpush1.msra.mxu0 %v80
    %102 = vmatprep.subr.mxu0 %v83
    %103 = vmatpush1.msra.mxu0 %v82
    %104 = vmatprep.subr.mxu0 0.0
    %105 = vmatpush1.msra.mxu0 0.0
    %106 = vmatprep.subr.mxu0 0.0
    %107 = vmatpush1.msra.mxu0 0.0
    %108 = vmatprep.subr.mxu0 0.0
    %109 = vmatpush1.msra.mxu0 0.0
    %110 = vmatprep.subr.mxu0 0.0
    %111 = vmatpush1.msra.mxu0 0.0
    %112 = vmatprep.subr.mxu0 0.0
    %113 = vmatpush1.msra.mxu0 0.0
    %114 = vmatprep.subr.mxu0 0.0
    %115 = vmatpush1.msra.mxu0 0.0
    %116 = vmatprep.subr.mxu0 0.0
    %117 = vmatpush1.msra.mxu0 0.0
    %118 = vmatprep.subr.mxu0 0.0
    %119 = vmatpush1.msra.mxu0 0.0
    %120 = vmatprep.subr.mxu0 0.0
    %121 = vmatpush1.msra.mxu0 0.0
    %122 = vmatprep.subr.mxu0 0.0
    %123 = vmatpush1.msra.mxu0 0.0
    %124 = vmatprep.subr.mxu0 0.0
    %125 = vmatpush1.msra.mxu0 0.0
    %126 = vmatprep.subr.mxu0 0.0
    %127 = vmatpush1.msra.mxu0 0.0
    %128 = vmatprep.subr.mxu0 0.0
    %129 = vmatpush1.msra.mxu0 0.0
    %130 = vmatprep.subr.mxu0 0.0
    %131 = vmatpush1.msra.mxu0 0.0
    %132 = vmatprep.subr.mxu0 0.0
    %133 = vmatpush1.msra.mxu0 0.0
    %134 = vmatprep.subr.mxu0 0.0
    %135 = vmatpush1.msra.mxu0 0.0
    %136 = vmatprep.subr.mxu0 0.0
    %137 = vmatpush1.msra.mxu0 0.0
    %138 = vmatprep.subr.mxu0 0.0
    %139 = vmatpush1.msra.mxu0 0.0
    %140 = vmatprep.subr.mxu0 0.0
    %141 = vmatpush1.msra.mxu0 0.0
    %142 = vmatprep.subr.mxu0 0.0
    %143 = vmatpush1.msra.mxu0 0.0
    %144 = vmatprep.subr.mxu0 0.0
    %145 = vmatpush1.msra.mxu0 0.0
    %146 = vmatprep.subr.mxu0 0.0
    %147 = vmatpush1.msra.mxu0 0.0
    %148 = vmatprep.subr.mxu0 0.0
    %149 = vmatpush1.msra.mxu0 0.0
    %150 = vmatprep.subr.mxu0 0.0
    %151 = vmatpush1.msra.mxu0 0.0
    %152 = vmatprep.mubr.f32.mxu0 0.0
    %153 = vmatmul.mubr.f32.gmra.mrb[0].mxu0 %v86
    %v154 = vpop.f32.mrb[0].mxu0
    %v155 = vadd.f32 0.0, %v154
    %v156 = vpop.f32.mrb[0].mxu0
    %v157 = vadd.f32 0.0, %v156
    %158 = vdwg.mxu0
    %v159 = vmax.f32 %v155, 0.0
    %v160 = vmax.f32 %v157, 0.0
    %v161 = vmin.f32 %v159, 1.0
    %v162 = vmin.f32 %v160, 1.0
    %v163 = vld [vmem:[#allocation8] sm:$0xff]
    %v164 = vld [vmem:[#allocation8 + $0x8] sm:$0xff]
    %v165 = vlog2.pop %v161
    %v166 = vmul.f32 %v165, 0.6931472
    %v167 = vlog2.pop %v162
    %v168 = vmul.f32 %v167, 0.6931472
    %v169 = vmax.f32 %v166, -100.0
    %v170 = vmax.f32 %v168, -100.0
    %v171 = vsub.f32 1.0, %v161
    %v172 = vsub.f32 1.0, %v162
    %v173 = vlog2.pop %v171
    %v174 = vmul.f32 %v173, 0.6931472
    %v175 = vlog2.pop %v172
    %v176 = vmul.f32 %v175, 0.6931472
    %v177 = vmax.f32 %v174, -100.0
    %v178 = vmax.f32 %v176, -100.0
    %v179 = vmul.f32 %v163, %v169
    %v180 = vmul.f32 %v164, %v170
    %v181 = vsub.f32 1.0, %v163
    %v182 = vsub.f32 1.0, %v164
    %v183 = vmul.f32 %v181, %v177
    %v184 = vmul.f32 %v182, %v178
    %v185 = vadd.f32 %v179, %v183
    %v186 = vadd.f32 %v180, %v184
    %v187 = vsub.f32 0.0, %v185
    %v188 = vsub.f32 0.0, %v186
    %v189 = vld [vmem:[#allocation2] sm:$0xff]
    %v190 = vld [vmem:[#allocation2 + $0x8] sm:$0xff]
    %v191 = vadd.f32 %v187, 0.0
    %v192 = vadd.f32 %v188, 0.0
    %v193 = vadd.f32 %v189, %v191
    %v194 = vadd.f32 %v190, %v192
    %195 = vst [vmem:[#allocation2] sm:$0xff] %v193
    %196 = vst [vmem:[#allocation2 + $0x8] sm:$0xff] %v194
    // Predicated region
    $region30: #{tpu_custom_call.1} parent=1 // pred_check
      %p197 = pneg %p61
    $region31: #{tpu_custom_call.1} parent=1 // pred_check_branch
      %199 = sbr.rel (%p197) target = $region33
    $region32: #{tpu_custom_call.1} parent=1 // pred_region
      %v200 = vld [vmem:[#allocation2] sm:$0xff]
      %v201 = vld [vmem:[#allocation2 + $0x8] sm:$0xff]
      %v202 = vadd.f32 %v200, %v201
      %203 = vadd.xlane.f32.xlu0 %v202
      %v204 = vpop.xlane.xlu0 %203
      %v205 = vrot.slane %v204, 4
      %v206 = vadd.f32 %v204, %v205
      %v207 = vrot.slane %v206, 2
      %v208 = vadd.f32 %v206, %v207
      %v209 = vrot.slane %v208, 1
      %v210 = vadd.f32 %v208, %v209
      %s211 = vtos %v210
      %v212 = vlaneseq
      %v213 = vshrl.u32 %v212, 7
      %v214 = vlaneseq
      %v215 = vand.u32 %v214, 127
      %vm216 = vcmp.eq.s32.totalorder %v213, 0
      %vm217 = vcmp.eq.s32.totalorder %v215, 0
      %vm218 = vmand %vm216, %vm217
      %v219 = vstv %s211
      %v220 = vsel %vm218, %v219, 0.0
      %221 = vst [vmem:[#allocation9] sm:$0xff] %v220
    $region33: #{tpu_custom_call.1} parent=1 // pred_fallthru
      _
    // Predicated region
    $region34: #{tpu_custom_call.1} parent=1 // pred_check
      _
    $region35: #{tpu_custom_call.1} parent=1 // pred_check_branch
      %223 = sbr.rel (0) target = $region37
    $region36: #{tpu_custom_call.1} parent=1 // pred_region
      %s225 = ssub.s32 128, 128
      %226 = vsyncadd [#allocation5], %s225
      %s228 = sshll.u32 [#allocation9], 4
      %s229 = int_to_ptr.vmem [resolvable:$true] %s228
      %231 = dma.vmem_to_hbm [thread:$0]  %s229, 128, %s3, [#allocation5]
    $region37: #{tpu_custom_call.1} parent=1 // pred_fallthru
      _
    // Predicated region
    $region38: #{tpu_custom_call.1} parent=1 // pred_check
      _
    $region39: #{tpu_custom_call.1} parent=1 // pred_check_branch
      %233 = sbr.rel (0) target = $region41
    $region40: #{tpu_custom_call.1} parent=1 // pred_region
      %234 = dma.done [#allocation5], 128
    $region41: #{tpu_custom_call.1} parent=1 // pred_fallthru
      _
    %235 = vsyncpa [#allocation4], 1
    %236 = vsyncpa [#allocation7], 1
    %237 = vsyncpa [#allocation5], 1

</llo_original>
